<compile_context>
chip_gen: v7x
topology: tpu7x:2x2x1
jax: 0.10.0
libtpu: 0.0.40
codegen_flags: <defaults>
</compile_context>

<pallas_src>
import functools

import jax
import jax.numpy as jnp
from jax.experimental import pallas as pl
from jax.experimental.pallas import tpu as pltpu


_FUSED_VMEM_BUDGET = 40 * 1024 * 1024   # choose fused path only below this
_FUSED_VMEM_LIMIT = 48 * 1024 * 1024    # scoped VMEM to request for fused path


# ----------------------------------------------------------------------------
# Shared helper: k-tap channel conv (Conv1d(1,1,k, pad=(k-1)//2)) + sigmoid.
#   y     : (C, 1) float32 (channels on the sublane axis)
#   w_ref : (k,)  float32 in SMEM (scalar-prefetched Conv1d weights)
# ----------------------------------------------------------------------------
def _channel_conv_sigmoid(y, w_ref):
    C = y.shape[0]
    k = w_ref.shape[0]
    pad = (k - 1) // 2
    cidx = jax.lax.broadcasted_iota(jnp.int32, (C, 1), 0)
    acc = jnp.zeros_like(y)
    for t in range(k):                      # k is tiny & static (default 3)
        off = t - pad                       # out[c] += w[t] * y[c + off]
        if off == 0:
            tap = y
        else:
            rolled = pltpu.roll(y, shift=(-off) % C, axis=0)   # rolled[c] = y[(c+off)%C]
            valid = jnp.logical_and(cidx + off >= 0, cidx + off < C)
            tap = jnp.where(valid, rolled, 0.0)
        acc = acc + w_ref[t] * tap          # scalar (SMEM) * vector
    return jax.nn.sigmoid(acc)


# ----------------------------------------------------------------------------
# Fused single-pass kernel: one batch element's (C, HW) slab per grid step.
# ----------------------------------------------------------------------------
def _acb_fused_kernel(w_ref, x_ref, o_ref):
    x = x_ref[...]                                               # (C, HW), native dtype
    inv_hw = 1.0 / x.shape[1]
    s = jnp.sum(x, axis=1, keepdims=True, dtype=jnp.float32) * inv_hw   # avg pool
    m = jnp.max(x, axis=1, keepdims=True).astype(jnp.float32)           # max pool
    g = _channel_conv_sigmoid(s + m, w_ref)                      # (C, 1) f32
    o_ref[...] = (x * g.astype(x.dtype)).astype(o_ref.dtype)     # gate in input dtype


def _acb_fused(x3, w):
    B, C, HW = x3.shape
    itemsize = jnp.dtype(x3.dtype).itemsize
    return pl.pallas_call(
        _acb_fused_kernel,
        out_shape=jax.ShapeDtypeStruct((B, C, HW), x3.dtype),
        grid_spec=pltpu.PrefetchScalarGridSpec(
            num_scalar_prefetch=1,
            grid=(B,),
            in_specs=[pl.BlockSpec((pl.Squeezed(), C, HW), lambda b, w_ref: (b, 0, 0))],
            out_specs=pl.BlockSpec((pl.Squeezed(), C, HW), lambda b, w_ref: (b, 0, 0)),
        ),
        compiler_params=pltpu.CompilerParams(
            dimension_semantics=("parallel",),
            vmem_limit_bytes=_FUSED_VMEM_LIMIT,
        ),
        cost_estimate=pl.CostEstimate(
            flops=int(3 * B * C * HW),
            transcendentals=int(B * C),
            bytes_accessed=int(2 * B * C * HW * itemsize),
        ),
    )(w, x3)


# ----------------------------------------------------------------------------
# Two-pass path (for slabs that do not fit VMEM, or to get more grid steps).
# Pass 1: tiled reduction over HW (sum + max) -> conv -> sigmoid -> g (B, C, 1)
# Pass 2: elementwise gate out = x * g, tiled over HW.
# ----------------------------------------------------------------------------
def _acb_reduce_kernel(w_ref, x_ref, g_ref, sum_sc, max_sc, *, inv_hw):
    j = pl.program_id(1)

    @pl.when(j == 0)
    def _init():
        sum_sc[...] = jnp.zeros_like(sum_sc)
        max_sc[...] = jnp.full_like(max_sc, -jnp.inf)

    x = x_ref[...]                                               # (C, thw)
    sum_sc[...] += jnp.sum(x, axis=1, keepdims=True, dtype=jnp.float32)
    max_sc[...] = jnp.maximum(
        max_sc[...], jnp.max(x, axis=1, keepdims=True).astype(jnp.float32))

    @pl.when(j == pl.num_programs(1) - 1)
    def _finalize():
        y = sum_sc[...] * inv_hw + max_sc[...]
        g_ref[...] = _channel_conv_sigmoid(y, w_ref)


def _acb_gate_kernel(x_ref, g_ref, o_ref):
    x = x_ref[...]                                               # (C, thw)
    g = g_ref[...].astype(x.dtype)                               # (C, 1)
    o_ref[...] = (x * g).astype(o_ref.dtype)


def _pick_hw_tile(hw, c, itemsize, target_bytes=2 << 20):
    """Largest divisor of hw with c*thw*itemsize <= target, preferring lane-dense."""
    max_thw = max(1, target_bytes // max(1, c * itemsize))
    if hw <= max_thw:
        return hw
    divs = [d for d in range(1, hw + 1) if hw % d == 0 and d <= max_thw]
    lane_dense = [d for d in divs if d % 128 == 0]
    if lane_dense:
        return max(lane_dense)
    return max(divs) if divs else hw


def _acb_two_pass(x3, w, hw_tile=None):
    B, C, HW = x3.shape
    itemsize = jnp.dtype(x3.dtype).itemsize
    thw = hw_tile if hw_tile is not None else _pick_hw_tile(HW, C, itemsize)
    assert HW % thw == 0, (HW, thw)
    n_hw = HW // thw

    g = pl.pallas_call(
        functools.partial(_acb_reduce_kernel, inv_hw=1.0 / HW),
        out_shape=jax.ShapeDtypeStruct((B, C, 1), jnp.float32),
        grid_spec=pltpu.PrefetchScalarGridSpec(
            num_scalar_prefetch=1,
            grid=(B, n_hw),
            in_specs=[
                pl.BlockSpec((pl.Squeezed(), C, thw), lambda b, j, w_ref: (b, 0, j)),
            ],
            out_specs=pl.BlockSpec((pl.Squeezed(), C, 1), lambda b, j, w_ref: (b, 0, 0)),
            scratch_shapes=[
                pltpu.VMEM((C, 1), jnp.float32),    # running sum
                pltpu.VMEM((C, 1), jnp.float32),    # running max
            ],
        ),
        compiler_params=pltpu.CompilerParams(
            dimension_semantics=("parallel", "arbitrary"),
        ),
        cost_estimate=pl.CostEstimate(
            flops=int(2 * B * C * HW),
            transcendentals=int(B * C),
            bytes_accessed=int(B * C * HW * itemsize + B * C * 4),
        ),
    )(w, x3)

    out = pl.pallas_call(
        _acb_gate_kernel,
        out_shape=jax.ShapeDtypeStruct((B, C, HW), x3.dtype),
        grid=(B, n_hw),
        in_specs=[
            pl.BlockSpec((pl.Squeezed(), C, thw), lambda b, j: (b, 0, j)),
            pl.BlockSpec((pl.Squeezed(), C, 1), lambda b, j: (b, 0, 0)),
        ],
        out_specs=pl.BlockSpec((pl.Squeezed(), C, thw), lambda b, j: (b, 0, j)),
        compiler_params=pltpu.CompilerParams(
            dimension_semantics=("parallel", "parallel"),
        ),
        cost_estimate=pl.CostEstimate(
            flops=int(B * C * HW),
            transcendentals=0,
            bytes_accessed=int(2 * B * C * HW * itemsize + B * C * 4),
        ),
    )(x3, g)
    return out


# ----------------------------------------------------------------------------
# Public forward
# ----------------------------------------------------------------------------
def acb_forward(x, conv_w, *, force_two_pass=False, hw_tile=None):
    """x: (B, C, H, W); conv_w: (k,) Conv1d kernel (PyTorch weight[0, 0, :])."""
    B, C, H, W = x.shape
    HW = H * W
    w = conv_w.astype(jnp.float32)
    x3 = x.reshape(B, C, HW)                        # contiguous; HW on the lane axis
    itemsize = jnp.dtype(x.dtype).itemsize
    # Double-buffered input + output slabs per grid step.
    fused_bytes = 4 * C * HW * itemsize + (64 << 10)
    if force_two_pass or fused_bytes > _FUSED_VMEM_BUDGET:
        out3 = _acb_two_pass(x3, w, hw_tile=hw_tile)
    else:
        out3 = _acb_fused(x3, w)
    return out3.reshape(B, C, H, W)


# ----------------------------------------------------------------------------
# Pure-JAX reference (correctness verification only)
# ----------------------------------------------------------------------------
def acb_reference(x, conv_w):
    B, C, H, W = x.shape
    y = jnp.mean(x, axis=(2, 3)) + jnp.max(x, axis=(2, 3))          # (B, C)
    k = conv_w.shape[0]
    pad = (k - 1) // 2
    yp = jnp.pad(y, ((0, 0), (pad, pad)))
    conv = sum(conv_w[t] * yp[:, t:t + C] for t in range(k))        # (B, C)
    g = jax.nn.sigmoid(conv)
    return x * g[:, :, None, None]


if __name__ == "__main__":
    key = jax.random.PRNGKey(0)
    kx, kw = jax.random.split(key)

    B, C, H, W = 2, 64, 16, 16
    k_size = 3
    x = jax.random.normal(kx, (B, C, H, W), jnp.float32)
    # PyTorch Conv1d default init bound: 1/sqrt(in_channels * kernel_size)
    bound = 1.0 / (1 * k_size) ** 0.5
    conv_w = jax.random.uniform(kw, (k_size,), jnp.float32, -bound, bound)

    ref = acb_reference(x, conv_w)

    # 1) Fused single-pass path (default at this size).
    out_fused = jax.block_until_ready(jax.jit(acb_forward)(x, conv_w))
    assert out_fused.shape == (B, C, H, W), out_fused.shape
    assert out_fused.dtype == x.dtype
    err = float(jnp.max(jnp.abs(out_fused - ref)))
    assert err < 1e-4, f"fused path mismatch vs reference: {err}"

    # 2) Two-pass HW-split path (forced, with 2 HW tiles to exercise the
    #    multi-step reduction + finalize logic).
    fwd_two = jax.jit(functools.partial(acb_forward, force_two_pass=True, hw_tile=128))
    out_two = jax.block_until_ready(fwd_two(x, conv_w))
    err2 = float(jnp.max(jnp.abs(out_two - ref)))
    assert err2 < 1e-4, f"two-pass path mismatch vs reference: {err2}"

    # 3) bf16 input -> bf16 output (f32 accumulation inside the kernel).
    xb = x.astype(jnp.bfloat16)
    out_b = jax.block_until_ready(jax.jit(acb_forward)(xb, conv_w))
    assert out_b.dtype == jnp.bfloat16
    ref_b = acb_reference(xb.astype(jnp.float32), conv_w)
    err_b = float(jnp.max(jnp.abs(out_b.astype(jnp.float32) - ref_b)))
    assert err_b < 0.08, f"bf16 path mismatch vs reference: {err_b}"

    print("KERNEL_OK")
</pallas_src>

<mosaic_0001>
module attributes {stable_mosaic.version = 11 : i64} {
  func.func @_acb_fused_kernel(%arg0: i32, %arg1: memref<3xf32, #tpu.memory_space<smem>>, %arg2: memref<1x64x256xf32, #tpu.memory_space<vmem>>, %arg3: memref<1x64x256xf32, #tpu.memory_space<vmem>>) attributes {dimension_semantics = [#tpu.dimension_semantics<parallel>], iteration_bounds = array<i64: 2>, scalar_prefetch = 1 : i64, scratch_operands = 0 : i64, tpu.core_type = #tpu.core_type<tc>, window_params = [{transform_indices = @transform_0, window_bounds = array<i64: 1, 64, 256>}, {transform_indices = @transform_1, window_bounds = array<i64: 1, 64, 256>}]} {
    %c0 = arith.constant 0 : index
    %c0_0 = arith.constant 0 : index
    %c0_1 = arith.constant 0 : index
    %0 = vector.load %arg2[%c0, %c0_0, %c0_1] : memref<1x64x256xf32, #tpu.memory_space<vmem>>, vector<1x64x256xf32>
    %1 = vector.shape_cast %0 : vector<1x64x256xf32> to vector<64x256xf32>
    %cst = arith.constant dense<0.000000e+00> : vector<64xf32>
    %2 = vector.multi_reduction <add>, %1, %cst [1] : vector<64x256xf32> to vector<64xf32>
    %3 = vector.shape_cast %2 : vector<64xf32> to vector<64x1xf32>
    %cst_2 = arith.constant 3.906250e-03 : f32
    %4 = vector.broadcast %cst_2 : f32 to vector<64x1xf32>
    %5 = arith.mulf %3, %4 : vector<64x1xf32>
    %cst_3 = arith.constant dense<0xFF800000> : vector<64xf32>
    %6 = vector.multi_reduction <maximumf>, %1, %cst_3 [1] : vector<64x256xf32> to vector<64xf32>
    %7 = vector.shape_cast %6 : vector<64xf32> to vector<64x1xf32>
    %8 = arith.addf %5, %7 : vector<64x1xf32>
    %9 = tpu.iota {dimensions = array<i32: 0>} : vector<64x1xi32>
    %cst_4 = arith.constant 0.000000e+00 : f32
    %10 = vector.broadcast %cst_4 : f32 to vector<64x1xf32>
    %c1_i32 = arith.constant 1 : i32
    %11 = tpu.dynamic_rotate %8 by %c1_i32 dim 0 : vector<64x1xf32>, i32 -> vector<64x1xf32>
    %c-1_i32 = arith.constant -1 : i32
    %12 = vector.broadcast %c-1_i32 : i32 to vector<64x1xi32>
    %13 = arith.addi %9, %12 : vector<64x1xi32>
    %c0_i32 = arith.constant 0 : i32
    %14 = vector.broadcast %c0_i32 : i32 to vector<64x1xi32>
    %15 = arith.cmpi sge, %13, %14 : vector<64x1xi32>
    %c-1_i32_5 = arith.constant -1 : i32
    %16 = vector.broadcast %c-1_i32_5 : i32 to vector<64x1xi32>
    %17 = arith.addi %9, %16 : vector<64x1xi32>
    %c64_i32 = arith.constant 64 : i32
    %18 = vector.broadcast %c64_i32 : i32 to vector<64x1xi32>
    %19 = arith.cmpi slt, %17, %18 : vector<64x1xi32>
    %20 = arith.andi %15, %19 : vector<64x1xi1>
    %cst_6 = arith.constant 0.000000e+00 : f32
    %21 = vector.broadcast %cst_6 : f32 to vector<64x1xf32>
    %22 = arith.select %20, %11, %21 : vector<64x1xi1>, vector<64x1xf32>
    %c0_7 = arith.constant 0 : index
    %23 = memref.load %arg1[%c0_7] : memref<3xf32, #tpu.memory_space<smem>>
    %24 = vector.broadcast %23 : f32 to vector<64x1xf32>
    %25 = arith.mulf %24, %22 : vector<64x1xf32>
    %26 = arith.addf %10, %25 : vector<64x1xf32>
    %c1 = arith.constant 1 : index
    %27 = memref.load %arg1[%c1] : memref<3xf32, #tpu.memory_space<smem>>
    %28 = vector.broadcast %27 : f32 to vector<64x1xf32>
    %29 = arith.mulf %28, %8 : vector<64x1xf32>
    %30 = arith.addf %26, %29 : vector<64x1xf32>
    %c63_i32 = arith.constant 63 : i32
    %31 = tpu.dynamic_rotate %8 by %c63_i32 dim 0 : vector<64x1xf32>, i32 -> vector<64x1xf32>
    %c1_i32_8 = arith.constant 1 : i32
    %32 = vector.broadcast %c1_i32_8 : i32 to vector<64x1xi32>
    %33 = arith.addi %9, %32 : vector<64x1xi32>
    %c0_i32_9 = arith.constant 0 : i32
    %34 = vector.broadcast %c0_i32_9 : i32 to vector<64x1xi32>
    %35 = arith.cmpi sge, %33, %34 : vector<64x1xi32>
    %c1_i32_10 = arith.constant 1 : i32
    %36 = vector.broadcast %c1_i32_10 : i32 to vector<64x1xi32>
    %37 = arith.addi %9, %36 : vector<64x1xi32>
    %c64_i32_11 = arith.constant 64 : i32
    %38 = vector.broadcast %c64_i32_11 : i32 to vector<64x1xi32>
    %39 = arith.cmpi slt, %37, %38 : vector<64x1xi32>
    %40 = arith.andi %35, %39 : vector<64x1xi1>
    %cst_12 = arith.constant 0.000000e+00 : f32
    %41 = vector.broadcast %cst_12 : f32 to vector<64x1xf32>
    %42 = arith.select %40, %31, %41 : vector<64x1xi1>, vector<64x1xf32>
    %c2 = arith.constant 2 : index
    %43 = memref.load %arg1[%c2] : memref<3xf32, #tpu.memory_space<smem>>
    %44 = vector.broadcast %43 : f32 to vector<64x1xf32>
    %45 = arith.mulf %44, %42 : vector<64x1xf32>
    %46 = arith.addf %30, %45 : vector<64x1xf32>
    %47 = arith.negf %46 : vector<64x1xf32>
    %48 = math.exp %47 : vector<64x1xf32>
    %cst_13 = arith.constant 1.000000e+00 : f32
    %49 = vector.broadcast %cst_13 : f32 to vector<64x1xf32>
    %50 = arith.addf %49, %48 : vector<64x1xf32>
    %51 = arith.divf %49, %50 : vector<64x1xf32>
    %52 = vector.broadcast %51 : vector<64x1xf32> to vector<64x256xf32>
    %53 = arith.mulf %1, %52 : vector<64x256xf32>
    %c0_14 = arith.constant 0 : index
    %c0_15 = arith.constant 0 : index
    %c0_16 = arith.constant 0 : index
    %54 = vector.load %arg3[%c0_14, %c0_15, %c0_16] : memref<1x64x256xf32, #tpu.memory_space<vmem>>, vector<1x64x256xf32>
    %55 = vector.shape_cast %54 : vector<1x64x256xf32> to vector<64x256xf32>
    %56 = vector.shape_cast %53 : vector<64x256xf32> to vector<1x64x256xf32>
    tpu.vector_store %arg3[%c0_14, %c0_15, %c0_16], %56 {strides = array<i32>} : memref<1x64x256xf32, #tpu.memory_space<vmem>>, vector<1x64x256xf32>,
    return
  }
  func.func @transform_0(%arg0: i32, %arg1: memref<3xf32, #tpu.memory_space<smem>>) -> (i32, i32, i32) {
    %c0_i32 = arith.constant 0 : i32
    %c0_i32_0 = arith.constant 0 : i32
    %c0_i32_1 = arith.constant 0 : i32
    return %arg0, %c0_i32, %c0_i32_0 : i32, i32, i32
  }
  func.func @transform_1(%arg0: i32, %arg1: memref<3xf32, #tpu.memory_space<smem>>) -> (i32, i32, i32) {
    %c0_i32 = arith.constant 0 : i32
    %c0_i32_0 = arith.constant 0 : i32
    %c0_i32_1 = arith.constant 0 : i32
    return %arg0, %c0_i32, %c0_i32_0 : i32, i32, i32
  }
}

</mosaic_0001>

<llo_original>
// kernel: acb_forward.1
$region0: #{acb_forward.1}
  #allocation0 [shape = 'u32[]', space=smem, size = 0x4, offset = 0x4, fixed_abs, tag = 'smem constant byte address 0x4 - core index']
  #allocation1 [shape = 'u32[144,128]{1,0:T(1,128)}', space=vmem, size = 0x12000, scoped, tag = 'internal scratch']
  #allocation2 [shape = 's32[1]{0}', space=sflag, size = 0x4, scoped, tag = 'scoped memory for acb_forward.1']
  #allocation3 [shape = 'u8[512]{0}', space=smem, size = 0x200, scoped, tag = 'prefetched SMEM operand 0']
  %s0 = inlined_call_operand.vmem [shape: f32[3], index: 0, kind: input, shape index: {}]
  %s1 = inlined_call_operand.vmem [shape: f32[2,64,256], index: 1, kind: input, shape index: {}]
  %s2 = inlined_call_operand.vmem [shape: f32[2,64,256], index: 2, kind: output, shape index: {}]
  %s3 = sld [smem:[#allocation0]]
  $region37: #{acb_forward.1} parent=0
    _
  %s5 = ssub.s32 1, %s3
  %s6 = scalar_select 0, %s5, %s3
  %s7 = sshll.u32 %s0, 4
  %s8 = int_to_ptr.vmem [resolvable:$true] %s7
  %10 = dma.vmem_to_smem %s8, 16, [#allocation3], [#allocation2]
  %11 = dma.done [#allocation2], 16
  %12 = sfence
  loop: start=0, step=1, limit=4
  $region2: #{acb_forward.1} parent=0 // loop_pre_header
    _
  $region3: #{acb_forward.1} parent=0 // loop_header
    %s14 = sphi 0, %s18
    %p15 = scmp.ge.s32.totalorder %s14, 4
    %s24 = sphi 0, %s26
    %s27 = sphi 0, %s24
    %s28 = sphi 0, %s27
    %s44 = sphi 0, %s28
    %s50 = sphi 0, %s52
    %s53 = sphi 0, %s50
    %s54 = sphi 0, %s53
    %s70 = sphi 0, %s54
  $region4: #{acb_forward.1} parent=0 // loop_header_branch
    %17 = sbr.rel (%p15) target = $region8
  $region5: #{acb_forward.1} parent=0 // loop_body
    %s19 = ssub.s32 %s14, 1
    %s20 = ssub.s32 %s14, 2
    %s21 = sadd.s32 %s14, 1
    %s22 = ssub.s32 %s14, %s21
    %p23 = scmp.eq.s32.totalorder %s22, 0
    %s25 = sadd.s32 %s24, 1
    %s26 = scalar_select %p23, %s24, %s25
    %p29 = pneg %p23
    %p30 = scmp.eq.s32.totalorder %s14, 1
    %p31 = por %p29, %p30
    %p32 = scmp.ne.s32.totalorder %s24, %s27
    %p33 = scmp.eq.s32.totalorder %s14, 0
    %p34 = por %p32, %p33
    %p35 = scmp.ne.s32.totalorder %s24, %s27
    %p36 = scmp.eq.s32.totalorder %s19, 1
    %p37 = por %p35, %p36
    %p38 = scmp.ne.s32.totalorder %s27, %s28
    %p39 = scmp.eq.s32.totalorder %s19, 0
    %p40 = por %p38, %p39
    %p41 = scmp.ne.s32.totalorder %s27, %s28
    %p42 = scmp.eq.s32.totalorder %s20, 1
    %p43 = por %p41, %p42
    %p45 = scmp.ne.s32.totalorder %s28, %s44
    %p46 = scmp.eq.s32.totalorder %s20, 0
    %p47 = por %p45, %p46
    %s48 = ssub.s32 %s14, %s21
    %p49 = scmp.eq.s32.totalorder %s48, 0
    %s51 = sadd.s32 %s50, 1
    %s52 = scalar_select %p49, %s50, %s51
    %p55 = pneg %p49
    %p56 = scmp.eq.s32.totalorder %s14, 1
    %p57 = por %p55, %p56
    %p58 = scmp.ne.s32.totalorder %s50, %s53
    %p59 = scmp.eq.s32.totalorder %s14, 0
    %p60 = por %p58, %p59
    %p61 = scmp.ne.s32.totalorder %s50, %s53
    %p62 = scmp.eq.s32.totalorder %s19, 1
    %p63 = por %p61, %p62
    %p64 = scmp.ne.s32.totalorder %s53, %s54
    %p65 = scmp.eq.s32.totalorder %s19, 0
    %p66 = por %p64, %p65
    %p67 = scmp.ne.s32.totalorder %s53, %s54
    %p68 = scmp.eq.s32.totalorder %s20, 1
    %p69 = por %p67, %p68
    %p71 = scmp.ne.s32.totalorder %s54, %s70
    %p72 = scmp.eq.s32.totalorder %s20, 0
    %p73 = por %p71, %p72
    %p74 = scmp.le.s32.totalorder 1, %s14
    %p75 = scmp.lt.s32.totalorder %s14, 3
    %p76 = pnand %p74, %p75
    %p77 = pneg %p76
    // Predicated region
    $region9: #{acb_forward.1} parent=5 // pred_check
      _
    $region10: #{acb_forward.1} parent=5 // pred_check_branch
      %79 = sbr.rel (%p76) target = $region12
    $region11: #{acb_forward.1} parent=5 // pred_region
      %s80 = ssub.s32 %s14, 1
    $region12: #{acb_forward.1} parent=5 // pred_fallthru
      _
    %p81 = scmp.lt.s32.totalorder %s14, 2
    // Predicated region
    $region13: #{acb_forward.1} parent=5 // pred_check
      %p82 = pneg %p81
    $region14: #{acb_forward.1} parent=5 // pred_check_branch
      %84 = sbr.rel (%p82) target = $region16
    $region15: #{acb_forward.1} parent=5 // pred_region
      // Predicated region
      $region17: #{acb_forward.1} parent=15 // pred_check
        %p85 = pneg %p34
      $region18: #{acb_forward.1} parent=15 // pred_check_branch
        %87 = sbr.rel (%p85) target = $region20
      $region19: #{acb_forward.1} parent=15 // pred_region
        %p88 = scmp.lt.s32.totalorder %s14, 1
        %s89 = scalar_select %p88, %s14, 1
        %s90 = smul.addr %s89, 16
        %s91 = smul.addr %s90, 8
        %s92 = scalar_lea.vmem %s1, %s91
      $region20: #{acb_forward.1} parent=15 // pred_fallthru
        _
    $region16: #{acb_forward.1} parent=5 // pred_fallthru
      _
    %p93 = scmp.le.s32.totalorder 1, %s14
    %p94 = scmp.lt.s32.totalorder %s14, 3
    %p95 = pnand %p93, %p94
    %p96 = pneg %p95
    // Predicated region
    $region21: #{acb_forward.1} parent=5 // pred_check
      _
    $region22: #{acb_forward.1} parent=5 // pred_check_branch
      %98 = sbr.rel (%p95) target = $region24
    $region23: #{acb_forward.1} parent=5 // pred_region
      %s99 = ssub.s32 %s14, 1
      %p100 = scmp.lt.s32.totalorder %s19, 1
      %s101 = scalar_select %p100, %s19, 1
      %s102 = smul.addr %s101, 16
      %s103 = smul.addr %s102, 8
      %s104 = scalar_lea.vmem %s1, %s103
      %p105 = pneg %p40
      %p106 = pneg %p37
      %p107 = pneg %p66
      %p108 = pneg %p63
      %p109 = scmp.lt.s32.totalorder %s19, 1
      %s110 = scalar_select %p109, %s19, 1
      %s111 = smul.addr %s110, 16
      %s112 = smul.addr %s111, 8
      %s113 = scalar_lea.vmem %s2, %s112
      %p114 = scmp.lt.s32.totalorder %s19, 1
      %s115 = scalar_select %p114, %s19, 1
      %s116 = smul.addr %s115, 16
      %s117 = smul.addr %s116, 8
      %s118 = scalar_lea.vmem %s1, %s117
      %p119 = scmp.lt.s32.totalorder %s19, 1
      %s120 = scalar_select %p119, %s19, 1
      %s121 = smul.addr %s120, 16
      %s122 = smul.addr %s121, 8
      %s123 = scalar_lea.vmem %s2, %s122
      %v124 = vld [vmem:[%s118] sm:$0xff]
      %v125 = vld [vmem:[%s118 + $0x8] sm:$0xff]
      %v126 = vld [vmem:[%s118 + $0x10] sm:$0xff]
      %v127 = vld [vmem:[%s118 + $0x18] sm:$0xff]
      %v128 = vld [vmem:[%s118 + $0x20] sm:$0xff]
      %v129 = vld [vmem:[%s118 + $0x28] sm:$0xff]
      %v130 = vld [vmem:[%s118 + $0x30] sm:$0xff]
      %v131 = vld [vmem:[%s118 + $0x38] sm:$0xff]
      %v132 = vld [vmem:[%s118 + $0x40] sm:$0xff]
      %v133 = vld [vmem:[%s118 + $0x48] sm:$0xff]
      %v134 = vld [vmem:[%s118 + $0x50] sm:$0xff]
      %v135 = vld [vmem:[%s118 + $0x58] sm:$0xff]
      %v136 = vld [vmem:[%s118 + $0x60] sm:$0xff]
      %v137 = vld [vmem:[%s118 + $0x68] sm:$0xff]
      %v138 = vld [vmem:[%s118 + $0x70] sm:$0xff]
      %v139 = vld [vmem:[%s118 + $0x78] sm:$0xff]
      %v140 = vadd.f32 %v124, %v125
      %141 = vadd.xlane.f32.xlu0 %v140
      %v142 = vpop.xlane.xlu0 %141
      %v143 = vadd.f32 %v126, %v127
      %144 = vadd.xlane.f32.xlu0 %v143
      %v145 = vpop.xlane.xlu0 %144
      %v146 = vadd.f32 %v128, %v129
      %147 = vadd.xlane.f32.xlu0 %v146
      %v148 = vpop.xlane.xlu0 %147
      %v149 = vadd.f32 %v130, %v131
      %150 = vadd.xlane.f32.xlu0 %v149
      %v151 = vpop.xlane.xlu0 %150
      %v152 = vadd.f32 %v132, %v133
      %153 = vadd.xlane.f32.xlu0 %v152
      %v154 = vpop.xlane.xlu0 %153
      %v155 = vadd.f32 %v134, %v135
      %156 = vadd.xlane.f32.xlu0 %v155
      %v157 = vpop.xlane.xlu0 %156
      %v158 = vadd.f32 %v136, %v137
      %159 = vadd.xlane.f32.xlu0 %v158
      %v160 = vpop.xlane.xlu0 %159
      %v161 = vadd.f32 %v138, %v139
      %162 = vadd.xlane.f32.xlu0 %v161
      %v163 = vpop.xlane.xlu0 %162
      %v164 = vmul.f32 %v142, 0.00390625
      %v165 = vmul.f32 %v145, 0.00390625
      %v166 = vmul.f32 %v148, 0.00390625
      %v167 = vmul.f32 %v151, 0.00390625
      %v168 = vmul.f32 %v154, 0.00390625
      %v169 = vmul.f32 %v157, 0.00390625
      %v170 = vmul.f32 %v160, 0.00390625
      %v171 = vmul.f32 %v163, 0.00390625
      %v172 = vmax.f32 %v124, %v125
      %173 = vmax.xlane.f32.xlu0 %v172
      %v174 = vpop.xlane.xlu0 %173
      %v175 = vmax.f32 %v126, %v127
      %176 = vmax.xlane.f32.xlu0 %v175
      %v177 = vpop.xlane.xlu0 %176
      %v178 = vmax.f32 %v128, %v129
      %179 = vmax.xlane.f32.xlu0 %v178
      %v180 = vpop.xlane.xlu0 %179
      %v181 = vmax.f32 %v130, %v131
      %182 = vmax.xlane.f32.xlu0 %v181
      %v183 = vpop.xlane.xlu0 %182
      %v184 = vmax.f32 %v132, %v133
      %185 = vmax.xlane.f32.xlu0 %v184
      %v186 = vpop.xlane.xlu0 %185
      %v187 = vmax.f32 %v134, %v135
      %188 = vmax.xlane.f32.xlu0 %v187
      %v189 = vpop.xlane.xlu0 %188
      %v190 = vmax.f32 %v136, %v137
      %191 = vmax.xlane.f32.xlu0 %v190
      %v192 = vpop.xlane.xlu0 %191
      %v193 = vmax.f32 %v138, %v139
      %194 = vmax.xlane.f32.xlu0 %v193
      %v195 = vpop.xlane.xlu0 %194
      %v196 = vadd.f32 %v164, %v174
      %v197 = vadd.f32 %v165, %v177
      %v198 = vadd.f32 %v166, %v180
      %v199 = vadd.f32 %v167, %v183
      %v200 = vadd.f32 %v168, %v186
      %v201 = vadd.f32 %v169, %v189
      %v202 = vadd.f32 %v170, %v192
      %v203 = vadd.f32 %v171, %v195
      %v204 = vlaneseq
      %v205 = vshrl.u32 %v204, 7
      %v206 = vadd.s32 %v205, 8
      %v207 = vadd.s32 %v205, 16
      %v208 = vadd.s32 %v205, 24
      %v209 = vadd.s32 %v205, 32
      %v210 = vadd.s32 %v205, 40
      %v211 = vadd.s32 %v205, 48
      %v212 = vadd.s32 %v205, 56
      %v213 = vrot.slane %v196, 7
      %v214 = vrot.slane %v197, 7
      %v215 = vrot.slane %v198, 7
      %v216 = vrot.slane %v199, 7
      %v217 = vrot.slane %v200, 7
      %v218 = vrot.slane %v201, 7
      %v219 = vrot.slane %v202, 7
      %v220 = vrot.slane %v203, 7
      %vm221 = vcmp.lt.s32.totalorder %v205, 1
      %v222 = vsel %vm221, %v219, %v220
      %v223 = vsel %vm221, %v218, %v219
      %v224 = vsel %vm221, %v217, %v218
      %v225 = vsel %vm221, %v216, %v217
      %v226 = vsel %vm221, %v215, %v216
      %v227 = vsel %vm221, %v214, %v215
      %v228 = vsel %vm221, %v213, %v214
      %v229 = vsel %vm221, %v220, %v213
      %v230 = vadd.s32 %v205, 4294967295
      %v231 = vadd.s32 %v206, 4294967295
      %v232 = vadd.s32 %v207, 4294967295
      %v233 = vadd.s32 %v208, 4294967295
      %v234 = vadd.s32 %v209, 4294967295
      %v235 = vadd.s32 %v210, 4294967295
      %v236 = vadd.s32 %v211, 4294967295
      %v237 = vadd.s32 %v212, 4294967295
      %vm238 = vcmp.ge.s32.totalorder %v230, 0
      %vm239 = vcmp.ge.s32.totalorder %v231, 0
      %vm240 = vcmp.ge.s32.totalorder %v232, 0
      %vm241 = vcmp.ge.s32.totalorder %v233, 0
      %vm242 = vcmp.ge.s32.totalorder %v234, 0
      %vm243 = vcmp.ge.s32.totalorder %v235, 0
      %vm244 = vcmp.ge.s32.totalorder %v236, 0
      %vm245 = vcmp.ge.s32.totalorder %v237, 0
      %vm246 = vcmp.lt.s32.totalorder %v230, 64
      %vm247 = vcmp.lt.s32.totalorder %v231, 64
      %vm248 = vcmp.lt.s32.totalorder %v232, 64
      %vm249 = vcmp.lt.s32.totalorder %v233, 64
      %vm250 = vcmp.lt.s32.totalorder %v234, 64
      %vm251 = vcmp.lt.s32.totalorder %v235, 64
      %vm252 = vcmp.lt.s32.totalorder %v236, 64
      %vm253 = vcmp.lt.s32.totalorder %v237, 64
      %vm254 = vmand %vm238, %vm246
      %vm255 = vmand %vm239, %vm247
      %vm256 = vmand %vm240, %vm248
      %vm257 = vmand %vm241, %vm249
      %vm258 = vmand %vm242, %vm250
      %vm259 = vmand %vm243, %vm251
      %vm260 = vmand %vm244, %vm252
      %vm261 = vmand %vm245, %vm253
      %v262 = vsel %vm254, %v229, 0.0
      %v263 = vsel %vm255, %v228, 0.0
      %v264 = vsel %vm256, %v227, 0.0
      %v265 = vsel %vm257, %v226, 0.0
      %v266 = vsel %vm258, %v225, 0.0
      %v267 = vsel %vm259, %v224, 0.0
      %v268 = vsel %vm260, %v223, 0.0
      %v269 = vsel %vm261, %v222, 0.0
      %s270 = sld [smem:[#allocation3]]
      %v271 = vstv %s270
      %v272 = vmul.f32 %v271, %v262
      %v273 = vmul.f32 %v271, %v263
      %v274 = vmul.f32 %v271, %v264
      %v275 = vmul.f32 %v271, %v265
      %v276 = vmul.f32 %v271, %v266
      %v277 = vmul.f32 %v271, %v267
      %v278 = vmul.f32 %v271, %v268
      %v279 = vmul.f32 %v271, %v269
      %v280 = vadd.f32 %v272, 0.0
      %v281 = vadd.f32 %v273, 0.0
      %v282 = vadd.f32 %v274, 0.0
      %v283 = vadd.f32 %v275, 0.0
      %v284 = vadd.f32 %v276, 0.0
      %v285 = vadd.f32 %v277, 0.0
      %v286 = vadd.f32 %v278, 0.0
      %v287 = vadd.f32 %v279, 0.0
      %s288 = sld [smem:[#allocation3 + $0x1]]
      %v289 = vstv %s288
      %v290 = vmul.f32 %v289, %v196
      %v291 = vmul.f32 %v289, %v197
      %v292 = vmul.f32 %v289, %v198
      %v293 = vmul.f32 %v289, %v199
      %v294 = vmul.f32 %v289, %v200
      %v295 = vmul.f32 %v289, %v201
      %v296 = vmul.f32 %v289, %v202
      %v297 = vmul.f32 %v289, %v203
      %v298 = vadd.f32 %v280, %v290
      %v299 = vadd.f32 %v281, %v291
      %v300 = vadd.f32 %v282, %v292
      %v301 = vadd.f32 %v283, %v293
      %v302 = vadd.f32 %v284, %v294
      %v303 = vadd.f32 %v285, %v295
      %v304 = vadd.f32 %v286, %v296
      %v305 = vadd.f32 %v287, %v297
      %v306 = vrot.slane %v196, 1
      %v307 = vrot.slane %v197, 1
      %v308 = vrot.slane %v198, 1
      %v309 = vrot.slane %v199, 1
      %v310 = vrot.slane %v200, 1
      %v311 = vrot.slane %v201, 1
      %v312 = vrot.slane %v202, 1
      %v313 = vrot.slane %v203, 1
      %vm314 = vcmp.lt.s32.totalorder %v205, 7
      %v315 = vsel %vm314, %v312, %v313
      %v316 = vsel %vm314, %v311, %v312
      %v317 = vsel %vm314, %v310, %v311
      %v318 = vsel %vm314, %v309, %v310
      %v319 = vsel %vm314, %v308, %v309
      %v320 = vsel %vm314, %v307, %v308
      %v321 = vsel %vm314, %v306, %v307
      %v322 = vsel %vm314, %v313, %v306
      %v323 = vadd.s32 %v205, 1
      %v324 = vadd.s32 %v206, 1
      %v325 = vadd.s32 %v207, 1
      %v326 = vadd.s32 %v208, 1
      %v327 = vadd.s32 %v209, 1
      %v328 = vadd.s32 %v210, 1
      %v329 = vadd.s32 %v211, 1
      %v330 = vadd.s32 %v212, 1
      %vm331 = vcmp.ge.s32.totalorder %v323, 0
      %vm332 = vcmp.ge.s32.totalorder %v324, 0
      %vm333 = vcmp.ge.s32.totalorder %v325, 0
      %vm334 = vcmp.ge.s32.totalorder %v326, 0
      %vm335 = vcmp.ge.s32.totalorder %v327, 0
      %vm336 = vcmp.ge.s32.totalorder %v328, 0
      %vm337 = vcmp.ge.s32.totalorder %v329, 0
      %vm338 = vcmp.ge.s32.totalorder %v330, 0
      %vm339 = vcmp.lt.s32.totalorder %v323, 64
      %vm340 = vcmp.lt.s32.totalorder %v324, 64
      %vm341 = vcmp.lt.s32.totalorder %v325, 64
      %vm342 = vcmp.lt.s32.totalorder %v326, 64
      %vm343 = vcmp.lt.s32.totalorder %v327, 64
      %vm344 = vcmp.lt.s32.totalorder %v328, 64
      %vm345 = vcmp.lt.s32.totalorder %v329, 64
      %vm346 = vcmp.lt.s32.totalorder %v330, 64
      %vm347 = vmand %vm331, %vm339
      %vm348 = vmand %vm332, %vm340
      %vm349 = vmand %vm333, %vm341
      %vm350 = vmand %vm334, %vm342
      %vm351 = vmand %vm335, %vm343
      %vm352 = vmand %vm336, %vm344
      %vm353 = vmand %vm337, %vm345
      %vm354 = vmand %vm338, %vm346
      %v355 = vsel %vm347, %v321, 0.0
      %v356 = vsel %vm348, %v320, 0.0
      %v357 = vsel %vm349, %v319, 0.0
      %v358 = vsel %vm350, %v318, 0.0
      %v359 = vsel %vm351, %v317, 0.0
      %v360 = vsel %vm352, %v316, 0.0
      %v361 = vsel %vm353, %v315, 0.0
      %v362 = vsel %vm354, %v322, 0.0
      %s363 = sld [smem:[#allocation3 + $0x2]]
      %v364 = vstv %s363
      %v365 = vmul.f32 %v364, %v355
      %v366 = vmul.f32 %v364, %v356
      %v367 = vmul.f32 %v364, %v357
      %v368 = vmul.f32 %v364, %v358
      %v369 = vmul.f32 %v364, %v359
      %v370 = vmul.f32 %v364, %v360
      %v371 = vmul.f32 %v364, %v361
      %v372 = vmul.f32 %v364, %v362
      %v373 = vadd.f32 %v298, %v365
      %v374 = vadd.f32 %v299, %v366
      %v375 = vadd.f32 %v300, %v367
      %v376 = vadd.f32 %v301, %v368
      %v377 = vadd.f32 %v302, %v369
      %v378 = vadd.f32 %v303, %v370
      %v379 = vadd.f32 %v304, %v371
      %v380 = vadd.f32 %v305, %v372
      %v381 = vxor.u32 %v373, 2147483648
      %v382 = vxor.u32 %v374, 2147483648
      %v383 = vxor.u32 %v375, 2147483648
      %v384 = vxor.u32 %v376, 2147483648
      %v385 = vxor.u32 %v377, 2147483648
      %v386 = vxor.u32 %v378, 2147483648
      %v387 = vxor.u32 %v379, 2147483648
      %v388 = vxor.u32 %v380, 2147483648
      %v389 = vmul.f32 %v381, 1.442695
      %v390 = vpow.pop %v389
      %v391 = vmul.f32 %v382, 1.442695
      %v392 = vpow.pop %v391
      %v393 = vmul.f32 %v383, 1.442695
      %v394 = vpow.pop %v393
      %v395 = vmul.f32 %v384, 1.442695
      %v396 = vpow.pop %v395
      %v397 = vmul.f32 %v385, 1.442695
      %v398 = vpow.pop %v397
      %v399 = vmul.f32 %v386, 1.442695
      %v400 = vpow.pop %v399
      %v401 = vmul.f32 %v387, 1.442695
      %v402 = vpow.pop %v401
      %v403 = vmul.f32 %v388, 1.442695
      %v404 = vpow.pop %v403
      %v405 = vadd.f32 %v390, 1.0
      %v406 = vadd.f32 %v392, 1.0
      %v407 = vadd.f32 %v394, 1.0
      %v408 = vadd.f32 %v396, 1.0
      %v409 = vadd.f32 %v398, 1.0
      %v410 = vadd.f32 %v400, 1.0
      %v411 = vadd.f32 %v402, 1.0
      %v412 = vadd.f32 %v404, 1.0
      %v413 = vrcp.pop %v405
      %v414 = vmul.f32 1.0, %v413
      %v415 = vrcp.pop %v406
      %v416 = vmul.f32 1.0, %v415
      %v417 = vrcp.pop %v407
      %v418 = vmul.f32 1.0, %v417
      %v419 = vrcp.pop %v408
      %v420 = vmul.f32 1.0, %v419
      %v421 = vrcp.pop %v409
      %v422 = vmul.f32 1.0, %v421
      %v423 = vrcp.pop %v410
      %v424 = vmul.f32 1.0, %v423
      %v425 = vrcp.pop %v411
      %v426 = vmul.f32 1.0, %v425
      %v427 = vrcp.pop %v412
      %v428 = vmul.f32 1.0, %v427
      %430 = vset.pattern.permute.xlu0 0
      %431 = vperm.xlu0 %430, %v414
      %v432 = vpop.permute.xlu0 %431
      %435 = vset.pattern.permute.xlu0 0
      %436 = vperm.xlu0 %435, %v416
      %v437 = vpop.permute.xlu0 %436
      %440 = vset.pattern.permute.xlu0 0
      %441 = vperm.xlu0 %440, %v418
      %v442 = vpop.permute.xlu0 %441
      %445 = vset.pattern.permute.xlu0 0
      %446 = vperm.xlu0 %445, %v420
      %v447 = vpop.permute.xlu0 %446
      %450 = vset.pattern.permute.xlu0 0
      %451 = vperm.xlu0 %450, %v422
      %v452 = vpop.permute.xlu0 %451
      %455 = vset.pattern.permute.xlu0 0
      %456 = vperm.xlu0 %455, %v424
      %v457 = vpop.permute.xlu0 %456
      %460 = vset.pattern.permute.xlu0 0
      %461 = vperm.xlu0 %460, %v426
      %v462 = vpop.permute.xlu0 %461
      %465 = vset.pattern.permute.xlu0 0
      %466 = vperm.xlu0 %465, %v428
      %v467 = vpop.permute.xlu0 %466
      %v469 = vmul.f32 %v124, %v432
      %v470 = vmul.f32 %v125, %v432
      %v471 = vmul.f32 %v126, %v437
      %v472 = vmul.f32 %v127, %v437
      %v473 = vmul.f32 %v128, %v442
      %v474 = vmul.f32 %v129, %v442
      %v475 = vmul.f32 %v130, %v447
      %v476 = vmul.f32 %v131, %v447
      %v477 = vmul.f32 %v132, %v452
      %v478 = vmul.f32 %v133, %v452
      %v479 = vmul.f32 %v134, %v457
      %v480 = vmul.f32 %v135, %v457
      %v481 = vmul.f32 %v136, %v462
      %v482 = vmul.f32 %v137, %v462
      %v483 = vmul.f32 %v138, %v467
      %v484 = vmul.f32 %v139, %v467
      %485 = vst [vmem:[%s123] sm:$0xff] %v469
      %486 = vst [vmem:[%s123 + $0x8] sm:$0xff] %v470
      %487 = vst [vmem:[%s123 + $0x10] sm:$0xff] %v471
      %488 = vst [vmem:[%s123 + $0x18] sm:$0xff] %v472
      %489 = vst [vmem:[%s123 + $0x20] sm:$0xff] %v473
      %490 = vst [vmem:[%s123 + $0x28] sm:$0xff] %v474
      %491 = vst [vmem:[%s123 + $0x30] sm:$0xff] %v475
      %492 = vst [vmem:[%s123 + $0x38] sm:$0xff] %v476
      %493 = vst [vmem:[%s123 + $0x40] sm:$0xff] %v477
      %494 = vst [vmem:[%s123 + $0x48] sm:$0xff] %v478
      %495 = vst [vmem:[%s123 + $0x50] sm:$0xff] %v479
      %496 = vst [vmem:[%s123 + $0x58] sm:$0xff] %v480
      %497 = vst [vmem:[%s123 + $0x60] sm:$0xff] %v481
      %498 = vst [vmem:[%s123 + $0x68] sm:$0xff] %v482
      %499 = vst [vmem:[%s123 + $0x70] sm:$0xff] %v483
      %500 = vst [vmem:[%s123 + $0x78] sm:$0xff] %v484
      %p501 = scmp.lt.s32.totalorder %s19, 1
      %s502 = scalar_select %p501, %s19, 1
      %s503 = smul.addr %s502, 16
      %s504 = smul.addr %s503, 8
      %s505 = scalar_lea.vmem %s2, %s504
      // Predicated region
      $region25: #{acb_forward.1} parent=23 // pred_check
        %p506 = pneg %p63
      $region26: #{acb_forward.1} parent=23 // pred_check_branch
        %508 = sbr.rel (%p506) target = $region28
      $region27: #{acb_forward.1} parent=23 // pred_region
        _
      $region28: #{acb_forward.1} parent=23 // pred_fallthru
        _
    $region24: #{acb_forward.1} parent=5 // pred_fallthru
      _
    %p509 = scmp.le.s32.totalorder 2, %s14
    // Predicated region
    $region29: #{acb_forward.1} parent=5 // pred_check
      %p510 = pneg %p509
    $region30: #{acb_forward.1} parent=5 // pred_check_branch
      %512 = sbr.rel (%p510) target = $region32
    $region31: #{acb_forward.1} parent=5 // pred_region
      %s513 = ssub.s32 %s14, 2
      // Predicated region
      $region33: #{acb_forward.1} parent=31 // pred_check
        %p514 = pneg %p69
      $region34: #{acb_forward.1} parent=31 // pred_check_branch
        %516 = sbr.rel (%p514) target = $region36
      $region35: #{acb_forward.1} parent=31 // pred_region
        %p517 = scmp.lt.s32.totalorder %s20, 1
        %s518 = scalar_select %p517, %s20, 1
        %s519 = smul.addr %s518, 16
        %s520 = smul.addr %s519, 8
        %s521 = scalar_lea.vmem %s2, %s520
      $region36: #{acb_forward.1} parent=31 // pred_fallthru
        _
    $region32: #{acb_forward.1} parent=5 // pred_fallthru
      _
  $region6: #{acb_forward.1} parent=0 // loop_footer
    %s18 = sadd.s32 1, %s14
  $region7: #{acb_forward.1} parent=0 // loop_footer_branch
    %13 = sbr.rel target = $region3
  $region8: #{acb_forward.1} parent=0 // loop_exit
    _

</llo_original>
